<compile_context>
chip_gen: v6e
topology: v6e:2x2x1
jax: 0.10.0
libtpu: 0.0.40
codegen_flags: <defaults>
</compile_context>

<pallas_src>
import jax
import jax.numpy as jnp
from jax import lax
from jax.experimental import pallas as pl
from jax.experimental.pallas import tpu as pltpu

LN_EPS = 1e-5


def item_tower_kernel(x_ref, w1_ref, w2_ref, params_ref, o_ref):
    # params_ref rows: 0 = b1, 1 = b2, 2 = LN gamma, 3 = LN beta   (f32, (1, D) each)
    b1 = params_ref[0:1, :]
    b2 = params_ref[1:2, :]
    gamma = params_ref[2:3, :]
    beta = params_ref[3:4, :]

    # ---- Linear 1 (+ ReLU): bf16 MXU inputs, f32 accumulation --------------
    h = jnp.dot(x_ref[...], w1_ref[...], preferred_element_type=jnp.float32)
    h = jnp.maximum(h + b1, 0.0)                 # bias + ReLU in f32 (VPU)

    # Dropout: identity in eval mode (no-op).

    # ---- Linear 2: cast activations back to bf16 for the MXU ---------------
    y = jnp.dot(h.astype(w2_ref.dtype), w2_ref[...],
                preferred_element_type=jnp.float32)
    y = y + b2

    # ---- LayerNorm over the embedding dim, fused (single-pass) statistics --
    inv_d = jnp.float32(1.0 / y.shape[-1])
    s = jnp.sum(y, axis=-1, keepdims=True)
    s2 = jnp.sum(y * y, axis=-1, keepdims=True)
    mean = s * inv_d
    var = jnp.maximum(s2 * inv_d - mean * mean, 0.0)   # clamp for fp safety
    y_norm = (y - mean) * lax.rsqrt(var + LN_EPS)      # rsqrt -> EUP slot
    out = y_norm * gamma + beta

    o_ref[...] = out.astype(o_ref.dtype)


def _round_up(x, m):
    return ((x + m - 1) // m) * m


def item_tower_forward(x, w1, b1, w2, b2, gamma, beta, *, block_b=None):
    B, D = x.shape
    out_dtype = x.dtype

    # Adaptive batch tile: as large as practical (up to 512 rows of f32
    # epilogue temporaries, far below any VMEM limit at D <= 1024) so small
    # batches run in one grid step while large batches still form a
    # multi-step "parallel" grid for megacore sharding.
    if block_b is None:
        block_b = min(512, _round_up(B, 8))
    B_pad = _round_up(B, block_b)

    # bf16 inputs for the MXU (f32 accumulation inside the kernel).
    x_in = x.astype(jnp.bfloat16)
    if B_pad != B:
        x_in = jnp.pad(x_in, ((0, B_pad - B), (0, 0)))
    w1b = w1.astype(jnp.bfloat16)
    w2b = w2.astype(jnp.bfloat16)

    # Pack the four 1-D params into one (4, D) f32 operand (lane-aligned
    # broadcast inside the kernel, single resident DMA).
    params = jnp.stack(
        [b1.astype(jnp.float32), b2.astype(jnp.float32),
         gamma.astype(jnp.float32), beta.astype(jnp.float32)],
        axis=0,
    )

    grid = (B_pad // block_b,)

    # Resident (grid-invariant) operands: single buffer is enough.
    resident = pl.Buffered(1)

    bytes_accessed = (
        x_in.size * x_in.dtype.itemsize
        + w1b.size * w1b.dtype.itemsize
        + w2b.size * w2b.dtype.itemsize
        + params.size * 4
        + B_pad * D * jnp.dtype(out_dtype).itemsize
    )
    cost = pl.CostEstimate(
        flops=4 * B_pad * D * D,          # two D x D matmuls per row
        transcendentals=B_pad,            # one rsqrt per row
        bytes_accessed=bytes_accessed,
    )

    out = pl.pallas_call(
        item_tower_kernel,
        out_shape=jax.ShapeDtypeStruct((B_pad, D), out_dtype),
        grid_spec=pltpu.PrefetchScalarGridSpec(
            num_scalar_prefetch=0,
            grid=grid,
            in_specs=[
                pl.BlockSpec((block_b, D), lambda i: (i, 0)),                     # x tile
                pl.BlockSpec((D, D), lambda i: (0, 0), pipeline_mode=resident),   # W1
                pl.BlockSpec((D, D), lambda i: (0, 0), pipeline_mode=resident),   # W2
                pl.BlockSpec((4, D), lambda i: (0, 0), pipeline_mode=resident),   # b1/b2/gamma/beta
            ],
            out_specs=pl.BlockSpec((block_b, D), lambda i: (i, 0)),
        ),
        compiler_params=pltpu.CompilerParams(
            dimension_semantics=("parallel",),
        ),
        cost_estimate=cost,
    )(x_in, w1b, w2b, params)

    if B_pad != B:
        out = out[:B]
    return out


def reference_forward_bf16(x, w1, b1, w2, b2, gamma, beta):
    """Same bf16-in / f32-accumulate numerics as the kernel."""
    xb = x.astype(jnp.bfloat16)
    w1b = w1.astype(jnp.bfloat16)
    w2b = w2.astype(jnp.bfloat16)
    h = jnp.dot(xb, w1b, preferred_element_type=jnp.float32) + b1
    h = jnp.maximum(h, 0.0)
    y = jnp.dot(h.astype(jnp.bfloat16), w2b, preferred_element_type=jnp.float32) + b2
    mean = jnp.mean(y, axis=-1, keepdims=True)
    var = jnp.mean((y - mean) ** 2, axis=-1, keepdims=True)
    return (y - mean) / jnp.sqrt(var + LN_EPS) * gamma + beta


def reference_forward_f32(x, w1, b1, w2, b2, gamma, beta):
    h = jnp.maximum(x @ w1 + b1, 0.0)
    y = h @ w2 + b2
    mean = jnp.mean(y, axis=-1, keepdims=True)
    var = jnp.mean((y - mean) ** 2, axis=-1, keepdims=True)
    return (y - mean) / jnp.sqrt(var + LN_EPS) * gamma + beta


if __name__ == "__main__":
    # Small shapes consistent with the module (embedding_dim scaled down to 128).
    B, D = 16, 128

    key = jax.random.PRNGKey(0)
    kx, kw1, kb1, kw2, kb2 = jax.random.split(key, 5)

    x = jax.random.normal(kx, (B, D), dtype=jnp.float32)

    # Deterministic parameter init (matching nn.Linear's uniform(-1/sqrt(D), 1/sqrt(D)) scale)
    bound = 1.0 / jnp.sqrt(jnp.float32(D))
    w1 = jax.random.uniform(kw1, (D, D), jnp.float32, -bound, bound)
    b1 = jax.random.uniform(kb1, (D,), jnp.float32, -bound, bound)
    w2 = jax.random.uniform(kw2, (D, D), jnp.float32, -bound, bound)
    b2 = jax.random.uniform(kb2, (D,), jnp.float32, -bound, bound)
    gamma = jnp.ones((D,), jnp.float32)   # LayerNorm weight init
    beta = jnp.zeros((D,), jnp.float32)   # LayerNorm bias init

    out = item_tower_forward(x, w1, b1, w2, b2, gamma, beta)
    out = jax.block_until_ready(out)
    assert out.shape == (B, D)

    # Tight check vs a reference using the same bf16-input / f32-accumulate path.
    ref_bf16 = reference_forward_bf16(x, w1, b1, w2, b2, gamma, beta)
    assert jnp.allclose(out, ref_bf16, atol=1e-2, rtol=1e-2), "mismatch vs bf16-path reference"

    # Loose sanity check vs the full-f32 reference (bf16 MXU inputs shift
    # results at the ~1e-2 level).
    ref_f32 = reference_forward_f32(x, w1, b1, w2, b2, gamma, beta)
    assert jnp.allclose(out, ref_f32, atol=8e-2, rtol=8e-2), "mismatch vs f32 reference"

    print("KERNEL_OK")
</pallas_src>

<mosaic_0001>
module attributes {stable_mosaic.version = 11 : i64} {
  func.func @item_tower_kernel(%arg0: i32, %arg1: memref<16x128xbf16, #tpu.memory_space<vmem>>, %arg2: memref<128x128xbf16, #tpu.memory_space<vmem>>, %arg3: memref<128x128xbf16, #tpu.memory_space<vmem>>, %arg4: memref<4x128xf32, #tpu.memory_space<vmem>>, %arg5: memref<16x128xf32, #tpu.memory_space<vmem>>) attributes {dimension_semantics = [#tpu.dimension_semantics<parallel>], iteration_bounds = array<i64: 1>, scalar_prefetch = 0 : i64, scratch_operands = 0 : i64, tpu.core_type = #tpu.core_type<tc>, window_params = [{transform_indices = @transform_0, window_bounds = array<i64: 16, 128>}, {pipeline_mode = #tpu.pipeline_mode<synchronous>, transform_indices = @transform_1, window_bounds = array<i64: 128, 128>}, {pipeline_mode = #tpu.pipeline_mode<synchronous>, transform_indices = @transform_2, window_bounds = array<i64: 128, 128>}, {pipeline_mode = #tpu.pipeline_mode<synchronous>, transform_indices = @transform_3, window_bounds = array<i64: 4, 128>}, {transform_indices = @transform_4, window_bounds = array<i64: 16, 128>}]} {
    %c0 = arith.constant 0 : index
    %c0_0 = arith.constant 0 : index
    %0 = vector.load %arg4[%c0, %c0_0] : memref<4x128xf32, #tpu.memory_space<vmem>>, vector<1x128xf32>
    %c1 = arith.constant 1 : index
    %c0_1 = arith.constant 0 : index
    %1 = vector.load %arg4[%c1, %c0_1] : memref<4x128xf32, #tpu.memory_space<vmem>>, vector<1x128xf32>
    %c2 = arith.constant 2 : index
    %c0_2 = arith.constant 0 : index
    %2 = vector.load %arg4[%c2, %c0_2] : memref<4x128xf32, #tpu.memory_space<vmem>>, vector<1x128xf32>
    %c3 = arith.constant 3 : index
    %c0_3 = arith.constant 0 : index
    %3 = vector.load %arg4[%c3, %c0_3] : memref<4x128xf32, #tpu.memory_space<vmem>>, vector<1x128xf32>
    %c0_4 = arith.constant 0 : index
    %c0_5 = arith.constant 0 : index
    %4 = vector.load %arg1[%c0_4, %c0_5] : memref<16x128xbf16, #tpu.memory_space<vmem>>, vector<16x128xbf16>
    %c0_6 = arith.constant 0 : index
    %c0_7 = arith.constant 0 : index
    %5 = vector.load %arg2[%c0_6, %c0_7] : memref<128x128xbf16, #tpu.memory_space<vmem>>, vector<128x128xbf16>
    %cst = arith.constant dense<0.000000e+00> : vector<16x128xf32>
    %6 = tpu.matmul %4, %5, %cst {dimension_numbers = #tpu.dot_dimension_numbers<[1], [0], [0], [1], [0, 0, 1, 1], [], []>} : vector<16x128xbf16>, vector<128x128xbf16>, vector<16x128xf32> -> vector<16x128xf32>
    %7 = vector.broadcast %0 : vector<1x128xf32> to vector<16x128xf32>
    %8 = arith.addf %6, %7 : vector<16x128xf32>
    %cst_8 = arith.constant 0.000000e+00 : f32
    %9 = vector.broadcast %cst_8 : f32 to vector<16x128xf32>
    %10 = arith.maximumf %8, %9 : vector<16x128xf32>
    %11 = arith.truncf %10 : vector<16x128xf32> to vector<16x128xbf16>
    %c0_9 = arith.constant 0 : index
    %c0_10 = arith.constant 0 : index
    %12 = vector.load %arg3[%c0_9, %c0_10] : memref<128x128xbf16, #tpu.memory_space<vmem>>, vector<128x128xbf16>
    %cst_11 = arith.constant dense<0.000000e+00> : vector<16x128xf32>
    %13 = tpu.matmul %11, %12, %cst_11 {dimension_numbers = #tpu.dot_dimension_numbers<[1], [0], [0], [1], [0, 0, 1, 1], [], []>} : vector<16x128xbf16>, vector<128x128xbf16>, vector<16x128xf32> -> vector<16x128xf32>
    %14 = vector.broadcast %1 : vector<1x128xf32> to vector<16x128xf32>
    %15 = arith.addf %13, %14 : vector<16x128xf32>
    %cst_12 = arith.constant dense<0.000000e+00> : vector<16xf32>
    %16 = vector.multi_reduction <add>, %15, %cst_12 [1] : vector<16x128xf32> to vector<16xf32>
    %17 = vector.shape_cast %16 : vector<16xf32> to vector<16x1xf32>
    %18 = arith.mulf %15, %15 : vector<16x128xf32>
    %cst_13 = arith.constant dense<0.000000e+00> : vector<16xf32>
    %19 = vector.multi_reduction <add>, %18, %cst_13 [1] : vector<16x128xf32> to vector<16xf32>
    %20 = vector.shape_cast %19 : vector<16xf32> to vector<16x1xf32>
    %cst_14 = arith.constant 7.812500e-03 : f32
    %21 = vector.broadcast %cst_14 : f32 to vector<16x1xf32>
    %22 = arith.mulf %17, %21 : vector<16x1xf32>
    %cst_15 = arith.constant 7.812500e-03 : f32
    %23 = vector.broadcast %cst_15 : f32 to vector<16x1xf32>
    %24 = arith.mulf %20, %23 : vector<16x1xf32>
    %25 = arith.mulf %22, %22 : vector<16x1xf32>
    %26 = arith.subf %24, %25 : vector<16x1xf32>
    %cst_16 = arith.constant 0.000000e+00 : f32
    %27 = vector.broadcast %cst_16 : f32 to vector<16x1xf32>
    %28 = arith.maximumf %26, %27 : vector<16x1xf32>
    %29 = vector.broadcast %22 : vector<16x1xf32> to vector<16x128xf32>
    %30 = arith.subf %15, %29 : vector<16x128xf32>
    %cst_17 = arith.constant 9.99999974E-6 : f32
    %31 = vector.broadcast %cst_17 : f32 to vector<16x1xf32>
    %32 = arith.addf %28, %31 : vector<16x1xf32>
    %33 = math.rsqrt %32 : vector<16x1xf32>
    %34 = vector.broadcast %33 : vector<16x1xf32> to vector<16x128xf32>
    %35 = arith.mulf %30, %34 : vector<16x128xf32>
    %36 = vector.broadcast %2 : vector<1x128xf32> to vector<16x128xf32>
    %37 = arith.mulf %35, %36 : vector<16x128xf32>
    %38 = vector.broadcast %3 : vector<1x128xf32> to vector<16x128xf32>
    %39 = arith.addf %37, %38 : vector<16x128xf32>
    %c0_18 = arith.constant 0 : index
    %c0_19 = arith.constant 0 : index
    %40 = vector.load %arg5[%c0_18, %c0_19] : memref<16x128xf32, #tpu.memory_space<vmem>>, vector<16x128xf32>
    tpu.vector_store %arg5[%c0_18, %c0_19], %39 {strides = array<i32>} : memref<16x128xf32, #tpu.memory_space<vmem>>, vector<16x128xf32>,
    return
  }
  func.func @transform_0(%arg0: i32) -> (i32, i32) {
    %c0_i32 = arith.constant 0 : i32
    %c0_i32_0 = arith.constant 0 : i32
    return %arg0, %c0_i32 : i32, i32
  }
  func.func @transform_1(%arg0: i32) -> (i32, i32) {
    %c0_i32 = arith.constant 0 : i32
    %c0_i32_0 = arith.constant 0 : i32
    %c0_i32_1 = arith.constant 0 : i32
    return %c0_i32, %c0_i32_0 : i32, i32
  }
  func.func @transform_2(%arg0: i32) -> (i32, i32) {
    %c0_i32 = arith.constant 0 : i32
    %c0_i32_0 = arith.constant 0 : i32
    %c0_i32_1 = arith.constant 0 : i32
    return %c0_i32, %c0_i32_0 : i32, i32
  }
  func.func @transform_3(%arg0: i32) -> (i32, i32) {
    %c0_i32 = arith.constant 0 : i32
    %c0_i32_0 = arith.constant 0 : i32
    %c0_i32_1 = arith.constant 0 : i32
    return %c0_i32, %c0_i32_0 : i32, i32
  }
  func.func @transform_4(%arg0: i32) -> (i32, i32) {
    %c0_i32 = arith.constant 0 : i32
    %c0_i32_0 = arith.constant 0 : i32
    return %arg0, %c0_i32 : i32, i32
  }
}

</mosaic_0001>

<llo_original>
// kernel: tpu_custom_call.1
$region0: #{tpu_custom_call.1}
  #allocation0 [shape = 'u32[]', space=smem, size = 0x4, offset = 0x4, fixed_abs, tag = 'smem constant byte address 0x4 - core index']
  #allocation1 [shape = 'u32[144,128]{1,0:T(1,128)}', space=vmem, size = 0x12000, scoped, tag = 'internal scratch']
  %s0 = inlined_call_operand.hbm [shape: bf16[16,128], index: 0, kind: input, shape index: {}]
  %s1 = inlined_call_operand.hbm [shape: bf16[128,128], index: 1, kind: input, shape index: {}]
  %s2 = inlined_call_operand.hbm [shape: bf16[128,128], index: 2, kind: input, shape index: {}]
  %s3 = inlined_call_operand.vmem [shape: f32[4,128], index: 3, kind: input, shape index: {}]
  %s4 = inlined_call_operand.hbm [shape: f32[16,128], index: 4, kind: output, shape index: {}]
  %s5 = sld [smem:[#allocation0]]
  $region38: #{tpu_custom_call.1} parent=0
    _
  %s7 = ssub.s32 1, %s5
  %s8 = scalar_select 0, %s7, %s5
  $region1: #{tpu_custom_call.1} parent=0
    #allocation2 [shape = 'u8[4096]{0}', space=vmem, size = 0x1000, scoped, tag = 'input window, operand 0, single buffered']
    #allocation3 [shape = 's32[1]{0}', space=sflag, size = 0x4, scoped, tag = 'scoped memory for tpu_custom_call.1']
    #allocation4 [shape = 's32[1]{0}', space=sflag, size = 0x4, scoped, tag = 'scoped memory for tpu_custom_call.1']
    #allocation5 [shape = 'u8[32768]{0}', space=vmem, size = 0x8000, scoped, tag = 'input window, operand 1, single buffered']
    #allocation6 [shape = 's32[1]{0}', space=sflag, size = 0x4, scoped, tag = 'scoped memory for tpu_custom_call.1']
    #allocation7 [shape = 'u8[32768]{0}', space=vmem, size = 0x8000, scoped, tag = 'input window, operand 2, single buffered']
    #allocation8 [shape = 'u8[8192]{0}', space=vmem, size = 0x2000, scoped, tag = 'output window, operand 0, single buffered']
    %9 = vsyncpa [#allocation3], 0
    %10 = vsyncpa [#allocation6], 0
    %11 = vsyncpa [#allocation4], 0
    // Predicated region
    $region2: #{tpu_custom_call.1} parent=1 // pred_check
      _
    $region3: #{tpu_custom_call.1} parent=1 // pred_check_branch
      %13 = sbr.rel (0) target = $region5
    $region4: #{tpu_custom_call.1} parent=1 // pred_region
      %s15 = ssub.s32 128, 128
      %16 = vsyncadd [#allocation3], %s15
      %s17 = sshll.u32 [#allocation2], 4
      %s18 = int_to_ptr.vmem [resolvable:$true] %s17
      %23 = dma.hbm_to_vmem [thread:$0]  %s0, 128, %s18, [#allocation3], 64, 64, 4
    $region5: #{tpu_custom_call.1} parent=1 // pred_fallthru
      _
    // Predicated region
    $region6: #{tpu_custom_call.1} parent=1 // pred_check
      _
    $region7: #{tpu_custom_call.1} parent=1 // pred_check_branch
      %25 = sbr.rel (0) target = $region9
    $region8: #{tpu_custom_call.1} parent=1 // pred_region
      %s27 = ssub.s32 1024, 1024
      %28 = vsyncadd [#allocation6], %s27
      %s29 = sshll.u32 [#allocation5], 4
      %s30 = int_to_ptr.vmem [resolvable:$true] %s29
      %35 = dma.hbm_to_vmem [thread:$0]  %s1, 1024, %s30, [#allocation6], 64, 64, 4
    $region9: #{tpu_custom_call.1} parent=1 // pred_fallthru
      _
    // Predicated region
    $region10: #{tpu_custom_call.1} parent=1 // pred_check
      _
    $region11: #{tpu_custom_call.1} parent=1 // pred_check_branch
      %37 = sbr.rel (0) target = $region13
    $region12: #{tpu_custom_call.1} parent=1 // pred_region
      %s39 = ssub.s32 1024, 1024
      %40 = vsyncadd [#allocation6], %s39
      %s41 = sshll.u32 [#allocation7], 4
      %s42 = int_to_ptr.vmem [resolvable:$true] %s41
      %47 = dma.hbm_to_vmem [thread:$0]  %s2, 1024, %s42, [#allocation6], 64, 64, 4
    $region13: #{tpu_custom_call.1} parent=1 // pred_fallthru
      _
    // Predicated region
    $region14: #{tpu_custom_call.1} parent=1 // pred_check
      _
    $region15: #{tpu_custom_call.1} parent=1 // pred_check_branch
      %49 = sbr.rel (0) target = $region17
    $region16: #{tpu_custom_call.1} parent=1 // pred_region
      _
    $region17: #{tpu_custom_call.1} parent=1 // pred_fallthru
      _
    // Predicated region
    $region18: #{tpu_custom_call.1} parent=1 // pred_check
      _
    $region19: #{tpu_custom_call.1} parent=1 // pred_check_branch
      %51 = sbr.rel (0) target = $region21
    $region20: #{tpu_custom_call.1} parent=1 // pred_region
      %52 = dma.done [#allocation3], 128
    $region21: #{tpu_custom_call.1} parent=1 // pred_fallthru
      _
    // Predicated region
    $region22: #{tpu_custom_call.1} parent=1 // pred_check
      _
    $region23: #{tpu_custom_call.1} parent=1 // pred_check_branch
      %54 = sbr.rel (0) target = $region25
    $region24: #{tpu_custom_call.1} parent=1 // pred_region
      %55 = dma.done [#allocation6], 1024
    $region25: #{tpu_custom_call.1} parent=1 // pred_fallthru
      _
    // Predicated region
    $region26: #{tpu_custom_call.1} parent=1 // pred_check
      _
    $region27: #{tpu_custom_call.1} parent=1 // pred_check_branch
      %57 = sbr.rel (0) target = $region29
    $region28: #{tpu_custom_call.1} parent=1 // pred_region
      %58 = dma.done [#allocation6], 1024
    $region29: #{tpu_custom_call.1} parent=1 // pred_fallthru
      _
    %v60 = vld [vmem:[%s3] sm:$0x1]
    %v61 = vld [vmem:[%s3 + $0x1] sm:$0x1]
    %v62 = vld [vmem:[%s3 + $0x2] sm:$0x1]
    %v63 = vld [vmem:[%s3 + $0x3] sm:$0x1]
    %v64 = vld [vmem:[#allocation2] sm:$0xf]
    %v65 = vld [vmem:[#allocation2 + $0x4] sm:$0xf]
    %v66 = vld [vmem:[#allocation5] sm:$0xf]
    %v67 = vld [vmem:[#allocation5 + $0x4] sm:$0xf]
    %v68 = vld [vmem:[#allocation5 + $0x8] sm:$0xf]
    %v69 = vld [vmem:[#allocation5 + $0xc] sm:$0xf]
    %v70 = vld [vmem:[#allocation5 + $0x10] sm:$0xf]
    %v71 = vld [vmem:[#allocation5 + $0x14] sm:$0xf]
    %v72 = vld [vmem:[#allocation5 + $0x18] sm:$0xf]
    %v73 = vld [vmem:[#allocation5 + $0x1c] sm:$0xf]
    %v74 = vld [vmem:[#allocation5 + $0x20] sm:$0xf]
    %v75 = vld [vmem:[#allocation5 + $0x24] sm:$0xf]
    %v76 = vld [vmem:[#allocation5 + $0x28] sm:$0xf]
    %v77 = vld [vmem:[#allocation5 + $0x2c] sm:$0xf]
    %v78 = vld [vmem:[#allocation5 + $0x30] sm:$0xf]
    %v79 = vld [vmem:[#allocation5 + $0x34] sm:$0xf]
    %v80 = vld [vmem:[#allocation5 + $0x38] sm:$0xf]
    %v81 = vld [vmem:[#allocation5 + $0x3c] sm:$0xf]
    %v82 = vlaneseq
    %v83 = vshrl.u32 %v82, 7
    %v84 = vsub.s32 0, %v83
    %v85 = vrot.slane %v60, %v84
    %v88 = vunpack.c.l.b16 %v64
    %v89 = vunpack.c.l.b16 %v65
    %v90 = vpack.c.b16 %v89, %v88
    %v108 = vunpack.c.l.b16 %v66
    %v109 = vunpack.c.l.b16 %v67
    %v110 = vunpack.c.l.b16 %v68
    %v111 = vunpack.c.l.b16 %v69
    %v112 = vunpack.c.l.b16 %v70
    %v113 = vunpack.c.l.b16 %v71
    %v114 = vunpack.c.l.b16 %v72
    %v115 = vunpack.c.l.b16 %v73
    %v116 = vunpack.c.l.b16 %v74
    %v117 = vunpack.c.l.b16 %v75
    %v118 = vunpack.c.l.b16 %v76
    %v119 = vunpack.c.l.b16 %v77
    %v120 = vunpack.c.l.b16 %v78
    %v121 = vunpack.c.l.b16 %v79
    %v122 = vunpack.c.l.b16 %v80
    %v123 = vunpack.c.l.b16 %v81
    %v124 = vpack.c.b16 %v109, %v108
    %v125 = vpack.c.b16 %v111, %v110
    %v126 = vpack.c.b16 %v113, %v112
    %v127 = vpack.c.b16 %v115, %v114
    %v128 = vpack.c.b16 %v117, %v116
    %v129 = vpack.c.b16 %v119, %v118
    %v130 = vpack.c.b16 %v121, %v120
    %v131 = vpack.c.b16 %v123, %v122
    %140 = vmatprep.subr.bf16.mxu0 0
    %141 = vmatpush1.bf16.msra.mxu0 %v131
    %142 = vmatprep.subr.bf16.mxu0 0
    %143 = vmatpush1.bf16.msra.mxu0 %v130
    %144 = vmatprep.subr.bf16.mxu0 0
    %145 = vmatpush1.bf16.msra.mxu0 %v129
    %146 = vmatprep.subr.bf16.mxu0 0
    %147 = vmatpush1.bf16.msra.mxu0 %v128
    %148 = vmatprep.subr.bf16.mxu0 0
    %149 = vmatpush1.bf16.msra.mxu0 %v127
    %150 = vmatprep.subr.bf16.mxu0 0
    %151 = vmatpush1.bf16.msra.mxu0 %v126
    %152 = vmatprep.subr.bf16.mxu0 0
    %153 = vmatpush1.bf16.msra.mxu0 %v125
    %154 = vmatprep.subr.bf16.mxu0 0
    %155 = vmatpush1.bf16.msra.mxu0 %v124
    %156 = vmatprep.subr.bf16.mxu0 0
    %157 = vmatpush2.bf16.msra.mxu0 0
    %158 = vmatprep.subr.bf16.mxu0 0
    %159 = vmatpush2.bf16.msra.mxu0 0
    %160 = vmatprep.subr.bf16.mxu0 0
    %161 = vmatpush2.bf16.msra.mxu0 0
    %162 = vmatprep.subr.bf16.mxu0 0
    %163 = vmatpush2.bf16.msra.mxu0 0
    %164 = vmatprep.subr.bf16.mxu0 0
    %165 = vmatpush2.bf16.msra.mxu0 0
    %166 = vmatprep.subr.bf16.mxu0 0
    %167 = vmatpush2.bf16.msra.mxu0 0
    %168 = vmatprep.subr.bf16.mxu0 0
    %169 = vmatpush2.bf16.msra.mxu0 0
    %170 = vmatprep.subr.bf16.mxu0 0
    %171 = vmatpush2.bf16.msra.mxu0 0
    %172 = vmatprep.mubr.bf16.mxu0 0
    %173 = vmatmul.mubr.bf16.gmra.mxu0 %v90
    %v174 = vpop.f32.mrf.mxu0
    %v175 = vadd.f32 %v85, %v174
    %v176 = vpop.f32.mrf.mxu0
    %v177 = vpop.f32.mrf.mxu0
    %v178 = vadd.f32 %v85, %v177
    %v179 = vpop.f32.mrf.mxu0
    %180 = vdwg.mxu0
    %v181 = vmax.f32 %v175, 0.0
    %v182 = vmax.f32 %v178, 0.0
    %v183 = vpack.c.bf16 %v182, %v181
    %v184 = vld [vmem:[#allocation7] sm:$0xf]
    %v185 = vld [vmem:[#allocation7 + $0x4] sm:$0xf]
    %v186 = vld [vmem:[#allocation7 + $0x8] sm:$0xf]
    %v187 = vld [vmem:[#allocation7 + $0xc] sm:$0xf]
    %v188 = vld [vmem:[#allocation7 + $0x10] sm:$0xf]
    %v189 = vld [vmem:[#allocation7 + $0x14] sm:$0xf]
    %v190 = vld [vmem:[#allocation7 + $0x18] sm:$0xf]
    %v191 = vld [vmem:[#allocation7 + $0x1c] sm:$0xf]
    %v192 = vld [vmem:[#allocation7 + $0x20] sm:$0xf]
    %v193 = vld [vmem:[#allocation7 + $0x24] sm:$0xf]
    %v194 = vld [vmem:[#allocation7 + $0x28] sm:$0xf]
    %v195 = vld [vmem:[#allocation7 + $0x2c] sm:$0xf]
    %v196 = vld [vmem:[#allocation7 + $0x30] sm:$0xf]
    %v197 = vld [vmem:[#allocation7 + $0x34] sm:$0xf]
    %v198 = vld [vmem:[#allocation7 + $0x38] sm:$0xf]
    %v199 = vld [vmem:[#allocation7 + $0x3c] sm:$0xf]
    %v200 = vlaneseq
    %v201 = vshrl.u32 %v200, 7
    %v202 = vsub.s32 0, %v201
    %v203 = vrot.slane %v61, %v202
    %v220 = vunpack.c.l.b16 %v184
    %v221 = vunpack.c.l.b16 %v185
    %v222 = vunpack.c.l.b16 %v186
    %v223 = vunpack.c.l.b16 %v187
    %v224 = vunpack.c.l.b16 %v188
    %v225 = vunpack.c.l.b16 %v189
    %v226 = vunpack.c.l.b16 %v190
    %v227 = vunpack.c.l.b16 %v191
    %v228 = vunpack.c.l.b16 %v192
    %v229 = vunpack.c.l.b16 %v193
    %v230 = vunpack.c.l.b16 %v194
    %v231 = vunpack.c.l.b16 %v195
    %v232 = vunpack.c.l.b16 %v196
    %v233 = vunpack.c.l.b16 %v197
    %v234 = vunpack.c.l.b16 %v198
    %v235 = vunpack.c.l.b16 %v199
    %v236 = vpack.c.b16 %v221, %v220
    %v237 = vpack.c.b16 %v223, %v222
    %v238 = vpack.c.b16 %v225, %v224
    %v239 = vpack.c.b16 %v227, %v226
    %v240 = vpack.c.b16 %v229, %v228
    %v241 = vpack.c.b16 %v231, %v230
    %v242 = vpack.c.b16 %v233, %v232
    %v243 = vpack.c.b16 %v235, %v234
    %252 = vmatprep.subr.bf16.mxu0 0
    %253 = vmatpush1.bf16.msra.mxu0 %v243
    %254 = vmatprep.subr.bf16.mxu0 0
    %255 = vmatpush1.bf16.msra.mxu0 %v242
    %256 = vmatprep.subr.bf16.mxu0 0
    %257 = vmatpush1.bf16.msra.mxu0 %v241
    %258 = vmatprep.subr.bf16.mxu0 0
    %259 = vmatpush1.bf16.msra.mxu0 %v240
    %260 = vmatprep.subr.bf16.mxu0 0
    %261 = vmatpush1.bf16.msra.mxu0 %v239
    %262 = vmatprep.subr.bf16.mxu0 0
    %263 = vmatpush1.bf16.msra.mxu0 %v238
    %264 = vmatprep.subr.bf16.mxu0 0
    %265 = vmatpush1.bf16.msra.mxu0 %v237
    %266 = vmatprep.subr.bf16.mxu0 0
    %267 = vmatpush1.bf16.msra.mxu0 %v236
    %268 = vmatprep.subr.bf16.mxu0 0
    %269 = vmatpush2.bf16.msra.mxu0 0
    %270 = vmatprep.subr.bf16.mxu0 0
    %271 = vmatpush2.bf16.msra.mxu0 0
    %272 = vmatprep.subr.bf16.mxu0 0
    %273 = vmatpush2.bf16.msra.mxu0 0
    %274 = vmatprep.subr.bf16.mxu0 0
    %275 = vmatpush2.bf16.msra.mxu0 0
    %276 = vmatprep.subr.bf16.mxu0 0
    %277 = vmatpush2.bf16.msra.mxu0 0
    %278 = vmatprep.subr.bf16.mxu0 0
    %279 = vmatpush2.bf16.msra.mxu0 0
    %280 = vmatprep.subr.bf16.mxu0 0
    %281 = vmatpush2.bf16.msra.mxu0 0
    %282 = vmatprep.subr.bf16.mxu0 0
    %283 = vmatpush2.bf16.msra.mxu0 0
    %284 = vmatprep.mubr.bf16.mxu0 0
    %285 = vmatmul.mubr.bf16.gmra.mxu0 %v183
    %v286 = vpop.f32.mrf.mxu0
    %v287 = vadd.f32 %v203, %v286
    %v288 = vpop.f32.mrf.mxu0
    %v289 = vpop.f32.mrf.mxu0
    %v290 = vadd.f32 %v203, %v289
    %v291 = vpop.f32.mrf.mxu0
    %292 = vdwg.mxu0
    %293 = vadd.xlane.f32.xlu0 %v287
    %v294 = vpop.xlane.xlu0 %293
    %295 = vadd.xlane.f32.xlu0 %v290
    %v296 = vpop.xlane.xlu0 %295
    %v297 = vmul.f32 %v287, %v287
    %v298 = vmul.f32 %v290, %v290
    %299 = vadd.xlane.f32.xlu0 %v297
    %v300 = vpop.xlane.xlu0 %299
    %301 = vadd.xlane.f32.xlu0 %v298
    %v302 = vpop.xlane.xlu0 %301
    %v303 = vmul.f32 %v294, 0.0078125
    %v304 = vmul.f32 %v296, 0.0078125
    %v305 = vmul.f32 %v300, 0.0078125
    %v306 = vmul.f32 %v302, 0.0078125
    %v307 = vmul.f32 %v303, %v303
    %v308 = vmul.f32 %v304, %v304
    %v309 = vsub.f32 %v305, %v307
    %v310 = vsub.f32 %v306, %v308
    %v311 = vmax.f32 %v309, 0.0
    %v312 = vmax.f32 %v310, 0.0
    %v313 = vsub.f32 %v287, %v303
    %v314 = vsub.f32 %v290, %v304
    %v315 = vadd.f32 %v311, 1e-05
    %v316 = vadd.f32 %v312, 1e-05
    %v317 = vrsqrt.pop %v315
    %v318 = vrsqrt.pop %v316
    %v319 = vmul.f32 %v313, %v317
    %v320 = vmul.f32 %v314, %v318
    %v321 = vlaneseq
    %v322 = vshrl.u32 %v321, 7
    %v323 = vsub.s32 0, %v322
    %v324 = vrot.slane %v62, %v323
    %v325 = vmul.f32 %v319, %v324
    %v326 = vmul.f32 %v320, %v324
    %v327 = vlaneseq
    %v328 = vshrl.u32 %v327, 7
    %v329 = vsub.s32 0, %v328
    %v330 = vrot.slane %v63, %v329
    %v331 = vadd.f32 %v325, %v330
    %v332 = vadd.f32 %v326, %v330
    %333 = vst [vmem:[#allocation8] sm:$0xff] %v331
    %334 = vst [vmem:[#allocation8 + $0x8] sm:$0xff] %v332
    // Predicated region
    $region30: #{tpu_custom_call.1} parent=1 // pred_check
      _
    $region31: #{tpu_custom_call.1} parent=1 // pred_check_branch
      %336 = sbr.rel (0) target = $region33
    $region32: #{tpu_custom_call.1} parent=1 // pred_region
      %s338 = ssub.s32 256, 256
      %339 = vsyncadd [#allocation4], %s338
      %s340 = sshll.u32 [#allocation8], 4
      %s341 = int_to_ptr.vmem [resolvable:$true] %s340
      %346 = dma.vmem_to_hbm [thread:$0]  %s341, 256, %s4, [#allocation4], 128, 128, 8
    $region33: #{tpu_custom_call.1} parent=1 // pred_fallthru
      _
    // Predicated region
    $region34: #{tpu_custom_call.1} parent=1 // pred_check
      _
    $region35: #{tpu_custom_call.1} parent=1 // pred_check_branch
      %348 = sbr.rel (0) target = $region37
    $region36: #{tpu_custom_call.1} parent=1 // pred_region
      %349 = dma.done [#allocation4], 256
    $region37: #{tpu_custom_call.1} parent=1 // pred_fallthru
      _
    %350 = vsyncpa [#allocation3], 1
    %351 = vsyncpa [#allocation6], 1
    %352 = vsyncpa [#allocation4], 1

</llo_original>
